<compile_context>
chip_gen: v6e
topology: v6e:2x2x1
jax: 0.10.0
libtpu: 0.0.40
codegen_flags: <defaults>
</compile_context>

<pallas_src>
import functools

import jax
import jax.numpy as jnp
from jax.experimental import pallas as pl
from jax.experimental.pallas import tpu as pltpu


def _focal_kernel(x_ref, t_ref, out_ref, acc_ref, *, alpha, gamma,
                  ignore_index, cols, valid_cols, tiles_per_split):
    s = pl.program_id(0)          # pixel-range split   ("parallel")
    j = pl.program_id(2)          # pixel-tile / reduction axis ("arbitrary")

    @pl.when(j == 0)
    def _():
        acc_ref[...] = jnp.zeros_like(acc_ref)

    x = x_ref[...].astype(jnp.float32)        # (C, ...)  classes leading
    tgt = t_ref[...].astype(jnp.int32)        # (1, ...)

    # Global column index of every lane in this tile. Handles both the ragged
    # tail of the pixel axis and the clamped duplicate tile of the split axis.
    tile_idx = s * tiles_per_split + j
    lane = jax.lax.broadcasted_iota(jnp.int32, tgt.shape, tgt.ndim - 1)
    in_bounds = (tile_idx * cols + lane) < valid_cols

    # Numerically-stable log-sum-exp over the class (leading) axis.
    m = jnp.max(x, axis=0, keepdims=True)
    lse = m + jnp.log(jnp.sum(jnp.exp(x - m), axis=0, keepdims=True))

    # Target logit: masked select + sum (cheaper than one-hot f32 multiply).
    # TODO(synk): class ids >= C (other than ignore_index) silently give
    # x_t = 0 instead of raising like torch.nn.functional.cross_entropy.
    cls = jax.lax.broadcasted_iota(jnp.int32, x.shape, 0)
    x_t = jnp.sum(jnp.where(cls == tgt, x, 0.0), axis=0, keepdims=True)

    valid = (tgt != ignore_index) & in_bounds
    ce = jnp.where(valid, lse - x_t, 0.0)

    # Compile-time specialization on gamma / alpha.
    if gamma == 0.0:
        focal = ce
    else:
        pt = jnp.exp(-ce)
        one_minus_pt = jnp.maximum(1.0 - pt, 0.0)   # clamp rounding negatives
        if gamma == 1.0:
            w = one_minus_pt
        elif gamma == 2.0:
            w = one_minus_pt * one_minus_pt
        else:
            w = jnp.power(one_minus_pt, gamma)
        focal = w * ce
    if alpha != 1.0:
        focal = focal * alpha

    # Masked positions (ignore_index, OOB columns) already contribute 0.
    acc_ref[...] += focal

    @pl.when(j == pl.num_programs(2) - 1)
    def _():
        out_ref[...] = jnp.sum(acc_ref[...]).reshape(1, 1)


def _choose_cols(C, S, hw_cols, itemsize, *, target_bytes=2 << 20,
                 max_pixels=65536, max_pixels_per_tile=None):
    """Lane-dim tile width (multiple of 128, or the full dim when small)."""
    if max_pixels_per_tile is not None:
        max_pixels = max(1, min(max_pixels, int(max_pixels_per_tile)))
    if hw_cols <= 128:
        return hw_cols                      # equals the full dim -> legal
    by_bytes = target_bytes // max(C * S * itemsize, 1)
    by_pixels = max(1, max_pixels // S)
    cols = max(128, (min(by_bytes, by_pixels) // 128) * 128)
    cols = min(cols, max(128, (hw_cols // 128) * 128))
    return cols


def focal_loss(inputs, targets, *, alpha=1.0, gamma=0.0, size_average=True,
               ignore_index=255, max_pixels_per_tile=None):
    N, C, H, W = inputs.shape
    HW = H * W
    in_itemsize = jnp.dtype(inputs.dtype).itemsize

    # Keep narrow integer targets narrow (less HBM traffic); widen in-kernel.
    if jnp.issubdtype(targets.dtype, jnp.integer) and \
            jnp.dtype(targets.dtype).itemsize <= 4:
        tgt = targets
    else:
        tgt = targets.astype(jnp.int32)

    # Layout (free reshapes, no wrapper data movement):
    #  * C < 8: pack 8 pixel-rows onto sublanes -> full vreg occupancy.
    #  * else : classes on sublanes (they already fill vregs well).
    use_packed = (C < 8) and (HW % 8 == 0)
    if use_packed:
        S, hw_cols = 8, HW // 8
        logits = inputs.reshape(N, C, 8, hw_cols)
        tgt = tgt.reshape(N, 1, 8, hw_cols)
    else:
        S, hw_cols = 1, HW
        logits = inputs.reshape(N, C, HW)
        tgt = tgt.reshape(N, 1, HW)

    cols = _choose_cols(C, S, hw_cols, in_itemsize,
                        max_pixels_per_tile=max_pixels_per_tile)
    total_tiles = pl.cdiv(hw_cols, cols)

    # Engage both v7x TensorCores even when N == 1 by splitting the pixel
    # range across a leading "parallel" axis (harmless on 1-TC chips).
    split = 2 if (N == 1 and total_tiles >= 2) else 1
    tps = pl.cdiv(total_tiles, split)

    def tile_index(s, j):
        # Clamp: if split does not divide total_tiles, the overhang iteration
        # maps to a duplicate tile that the kernel fully masks out.
        return jnp.minimum(s * tps + j, total_tiles - 1)

    if use_packed:
        in_specs = [
            pl.BlockSpec((None, C, 8, cols),
                         lambda s, n, j: (n, 0, 0, tile_index(s, j))),
            pl.BlockSpec((None, 1, 8, cols),
                         lambda s, n, j: (n, 0, 0, tile_index(s, j))),
        ]
        acc_shape = (1, 8, cols)
    else:
        in_specs = [
            pl.BlockSpec((None, C, cols),
                         lambda s, n, j: (n, 0, tile_index(s, j))),
            pl.BlockSpec((None, 1, cols),
                         lambda s, n, j: (n, 0, tile_index(s, j))),
        ]
        acc_shape = (1, cols)

    kernel = functools.partial(
        _focal_kernel, alpha=float(alpha), gamma=float(gamma),
        ignore_index=int(ignore_index), cols=int(cols),
        valid_cols=int(hw_cols), tiles_per_split=int(tps))

    # Explicit VMEM budget: 2 double-buffered input blocks + accumulator +
    # margin.  Capped at 48 MiB so it is safe on v7x's 64 MiB physical VMEM.
    block_bytes = (C * S * cols * in_itemsize
                   + S * cols * jnp.dtype(tgt.dtype).itemsize)
    needed = 2 * block_bytes + S * cols * 4 + (1 << 20)
    vmem_limit = int(min(max(2 * needed, 16 << 20), 48 << 20))

    partials = pl.pallas_call(
        kernel,
        out_shape=jax.ShapeDtypeStruct((split * N, 1, 1), jnp.float32),
        grid_spec=pltpu.PrefetchScalarGridSpec(
            num_scalar_prefetch=0,
            grid=(split, N, tps),
            in_specs=in_specs,
            out_specs=pl.BlockSpec((None, 1, 1),
                                   lambda s, n, j: (s * N + n, 0, 0)),
            scratch_shapes=[pltpu.VMEM(acc_shape, jnp.float32)],
        ),
        compiler_params=pltpu.CompilerParams(
            dimension_semantics=("parallel", "parallel", "arbitrary"),
            vmem_limit_bytes=vmem_limit),
    )(logits, tgt)

    total = jnp.sum(partials)
    if size_average:
        # PyTorch .mean() divides by ALL N*H*W elements (ignored positions
        # count in the denominator but contribute 0 to the numerator).
        return total / (N * HW)
    return total


def _focal_loss_ref(inputs, targets, *, alpha=1.0, gamma=0.0,
                    ignore_index=255, size_average=True):
    # Pure-JAX reference for sanity checking.
    logits = jnp.transpose(inputs, (0, 2, 3, 1)).astype(jnp.float32)  # N,H,W,C
    lse = jax.scipy.special.logsumexp(logits, axis=-1)
    t = targets.astype(jnp.int32)
    safe_t = jnp.where(t == ignore_index, 0, t)
    x_t = jnp.take_along_axis(logits, safe_t[..., None], axis=-1)[..., 0]
    valid = t != ignore_index
    ce = jnp.where(valid, lse - x_t, 0.0)
    pt = jnp.exp(-ce)
    focal = alpha * jnp.power(jnp.maximum(1.0 - pt, 0.0), gamma) * ce
    focal = jnp.where(valid, focal, 0.0)
    return jnp.mean(focal) if size_average else jnp.sum(focal)


def _check(inputs, targets, **kw):
    out = jax.block_until_ready(focal_loss(inputs, targets, **kw))
    ref_kw = {k: v for k, v in kw.items() if k != "max_pixels_per_tile"}
    ref = _focal_loss_ref(inputs, targets, **ref_kw)
    assert jnp.allclose(out, ref, rtol=1e-5, atol=1e-5), (out, ref)


if __name__ == "__main__":
    key = jax.random.PRNGKey(0)

    def make(shape_nchw, num_classes, k):
        k1, k2, k3 = jax.random.split(k, 3)
        N, C, H, W = shape_nchw
        x = jax.random.normal(k1, (N, C, H, W), dtype=jnp.float32)
        t = jax.random.randint(k2, (N, H, W), 0, num_classes, dtype=jnp.int32)
        t = jnp.where(jax.random.uniform(k3, (N, H, W)) < 0.1, 255, t)
        return x, t

    k1, k2, k3 = jax.random.split(key, 3)

    # Packed (C<8) layout, default alpha/gamma and the focal / sum branches.
    x, t = make((2, 4, 16, 16), 4, k1)
    _check(x, t, alpha=1.0, gamma=0.0, size_average=True, ignore_index=255)
    _check(x, t, alpha=0.5, gamma=2.0, size_average=True, ignore_index=255)
    _check(x, t, alpha=0.5, gamma=2.0, size_average=False, ignore_index=255)

    # Classes-on-sublanes layout (C >= 8), unaligned HW (in-kernel tail mask)
    # plus the 2-way pixel split for N == 1.
    x, t = make((1, 9, 33, 33), 9, k2)
    _check(x, t, alpha=0.25, gamma=2.0, size_average=True, ignore_index=255)

    # Packed layout, multi-tile reduction, 2-way split with an odd tile count
    # (exercises the clamped, fully-masked duplicate tile) at a forced small
    # tile size.
    x, t = make((1, 4, 48, 56), 4, k3)
    _check(x, t, alpha=1.0, gamma=2.0, size_average=True, ignore_index=255,
           max_pixels_per_tile=1024)

    print("KERNEL_OK")
</pallas_src>

<mosaic_0001>
module attributes {stable_mosaic.version = 11 : i64} {
  func.func @_focal_kernel(%arg0: i32, %arg1: i32, %arg2: i32, %arg3: memref<1x4x8x32xf32, #tpu.memory_space<vmem>>, %arg4: memref<1x1x8x32xi32, #tpu.memory_space<vmem>>, %arg5: memref<1x1x1xf32, #tpu.memory_space<vmem>>, %arg6: memref<1x8x32xf32, #tpu.memory_space<vmem>>) attributes {dimension_semantics = [#tpu.dimension_semantics<parallel>, #tpu.dimension_semantics<parallel>, #tpu.dimension_semantics<arbitrary>], iteration_bounds = array<i64: 1, 2, 1>, scalar_prefetch = 0 : i64, scratch_operands = 1 : i64, tpu.core_type = #tpu.core_type<tc>, window_params = [{transform_indices = @transform_0, window_bounds = array<i64: 1, 4, 8, 32>}, {transform_indices = @transform_1, window_bounds = array<i64: 1, 1, 8, 32>}, {transform_indices = @transform_2, window_bounds = array<i64: 1, 1, 1>}]} {
    %c0_i32 = arith.constant 0 : i32
    %0 = arith.cmpi eq, %arg2, %c0_i32 : i32
    %1 = arith.extui %0 : i1 to i32
    %c0_i32_0 = arith.constant 0 : i32
    %2 = arith.cmpi ne, %1, %c0_i32_0 : i32
    scf.if %2 {
      %cst_21 = arith.constant 0.000000e+00 : f32
      %43 = vector.broadcast %cst_21 : f32 to vector<1x8x32xf32>
      %c0_22 = arith.constant 0 : index
      %c0_23 = arith.constant 0 : index
      %c0_24 = arith.constant 0 : index
      %44 = vector.load %arg6[%c0_22, %c0_23, %c0_24] : memref<1x8x32xf32, #tpu.memory_space<vmem>>, vector<1x8x32xf32>
      tpu.vector_store %arg6[%c0_22, %c0_23, %c0_24], %43 {strides = array<i32>} : memref<1x8x32xf32, #tpu.memory_space<vmem>>, vector<1x8x32xf32>,
    } else {
    }
    %c0 = arith.constant 0 : index
    %c0_1 = arith.constant 0 : index
    %c0_2 = arith.constant 0 : index
    %c0_3 = arith.constant 0 : index
    %3 = vector.load %arg3[%c0, %c0_1, %c0_2, %c0_3] : memref<1x4x8x32xf32, #tpu.memory_space<vmem>>, vector<1x4x8x32xf32>
    %4 = vector.shape_cast %3 : vector<1x4x8x32xf32> to vector<4x8x32xf32>
    %c0_4 = arith.constant 0 : index
    %c0_5 = arith.constant 0 : index
    %c0_6 = arith.constant 0 : index
    %c0_7 = arith.constant 0 : index
    %5 = vector.load %arg4[%c0_4, %c0_5, %c0_6, %c0_7] : memref<1x1x8x32xi32, #tpu.memory_space<vmem>>, vector<1x1x8x32xi32>
    %6 = vector.shape_cast %5 : vector<1x1x8x32xi32> to vector<1x8x32xi32>
    %c1_i32 = arith.constant 1 : i32
    %7 = arith.muli %arg0, %c1_i32 : i32
    %8 = arith.addi %7, %arg2 : i32
    %9 = tpu.iota {dimensions = array<i32: 2>} : vector<1x8x32xi32>
    %c32_i32 = arith.constant 32 : i32
    %10 = arith.muli %8, %c32_i32 : i32
    %11 = vector.broadcast %10 : i32 to vector<1x8x32xi32>
    %12 = arith.addi %11, %9 : vector<1x8x32xi32>
    %c32_i32_8 = arith.constant 32 : i32
    %13 = vector.broadcast %c32_i32_8 : i32 to vector<1x8x32xi32>
    %14 = arith.cmpi slt, %12, %13 : vector<1x8x32xi32>
    %cst = arith.constant dense<0xFF800000> : vector<8x32xf32>
    %15 = vector.multi_reduction <maximumf>, %4, %cst [0] : vector<4x8x32xf32> to vector<8x32xf32>
    %16 = vector.shape_cast %15 : vector<8x32xf32> to vector<1x8x32xf32>
    %17 = vector.broadcast %16 : vector<1x8x32xf32> to vector<4x8x32xf32>
    %18 = arith.subf %4, %17 : vector<4x8x32xf32>
    %19 = math.exp %18 : vector<4x8x32xf32>
    %cst_9 = arith.constant dense<0.000000e+00> : vector<8x32xf32>
    %20 = vector.multi_reduction <add>, %19, %cst_9 [0] : vector<4x8x32xf32> to vector<8x32xf32>
    %21 = vector.shape_cast %20 : vector<8x32xf32> to vector<1x8x32xf32>
    %22 = math.log %21 : vector<1x8x32xf32>
    %23 = arith.addf %16, %22 : vector<1x8x32xf32>
    %24 = tpu.iota {dimensions = array<i32: 0>} : vector<4x8x32xi32>
    %25 = vector.broadcast %6 : vector<1x8x32xi32> to vector<4x8x32xi32>
    %26 = arith.cmpi eq, %24, %25 : vector<4x8x32xi32>
    %cst_10 = arith.constant 0.000000e+00 : f32
    %27 = vector.broadcast %cst_10 : f32 to vector<4x8x32xf32>
    %28 = arith.select %26, %4, %27 : vector<4x8x32xi1>, vector<4x8x32xf32>
    %cst_11 = arith.constant dense<0.000000e+00> : vector<8x32xf32>
    %29 = vector.multi_reduction <add>, %28, %cst_11 [0] : vector<4x8x32xf32> to vector<8x32xf32>
    %30 = vector.shape_cast %29 : vector<8x32xf32> to vector<1x8x32xf32>
    %c255_i32 = arith.constant 255 : i32
    %31 = vector.broadcast %c255_i32 : i32 to vector<1x8x32xi32>
    %32 = arith.cmpi ne, %6, %31 : vector<1x8x32xi32>
    %33 = arith.andi %32, %14 : vector<1x8x32xi1>
    %34 = arith.subf %23, %30 : vector<1x8x32xf32>
    %cst_12 = arith.constant 0.000000e+00 : f32
    %35 = vector.broadcast %cst_12 : f32 to vector<1x8x32xf32>
    %36 = arith.select %33, %34, %35 : vector<1x8x32xi1>, vector<1x8x32xf32>
    %c0_13 = arith.constant 0 : index
    %c0_14 = arith.constant 0 : index
    %c0_15 = arith.constant 0 : index
    %37 = vector.load %arg6[%c0_13, %c0_14, %c0_15] : memref<1x8x32xf32, #tpu.memory_space<vmem>>, vector<1x8x32xf32>
    %38 = arith.addf %37, %36 : vector<1x8x32xf32>
    %c0_16 = arith.constant 0 : index
    %c0_17 = arith.constant 0 : index
    %c0_18 = arith.constant 0 : index
    %39 = vector.load %arg6[%c0_16, %c0_17, %c0_18] : memref<1x8x32xf32, #tpu.memory_space<vmem>>, vector<1x8x32xf32>
    tpu.vector_store %arg6[%c0_16, %c0_17, %c0_18], %38 {strides = array<i32>} : memref<1x8x32xf32, #tpu.memory_space<vmem>>, vector<1x8x32xf32>,
    %c0_i32_19 = arith.constant 0 : i32
    %40 = arith.cmpi eq, %arg2, %c0_i32_19 : i32
    %41 = arith.extui %40 : i1 to i32
    %c0_i32_20 = arith.constant 0 : i32
    %42 = arith.cmpi ne, %41, %c0_i32_20 : i32
    scf.if %42 {
      %c0_21 = arith.constant 0 : index
      %c0_22 = arith.constant 0 : index
      %c0_23 = arith.constant 0 : index
      %43 = vector.load %arg6[%c0_21, %c0_22, %c0_23] : memref<1x8x32xf32, #tpu.memory_space<vmem>>, vector<1x8x32xf32>
      %44 = vector.shape_cast %43 : vector<1x8x32xf32> to vector<1x1x8x32xf32>
      %cst_24 = arith.constant dense<0.000000e+00> : vector<1xf32>
      %45 = vector.multi_reduction <add>, %44, %cst_24 [1, 2, 3] : vector<1x1x8x32xf32> to vector<1xf32>
      %46 = vector.shape_cast %45 : vector<1xf32> to vector<1x1x1x1xf32>
      %47 = vector.extract %46[0, 0, 0, 0] : f32 from vector<1x1x1x1xf32>
      %48 = vector.broadcast %47 : f32 to vector<1x1xf32>
      %c0_25 = arith.constant 0 : index
      %c0_26 = arith.constant 0 : index
      %c0_27 = arith.constant 0 : index
      %49 = vector.load %arg5[%c0_25, %c0_26, %c0_27] : memref<1x1x1xf32, #tpu.memory_space<vmem>>, vector<1x1x1xf32>
      %50 = vector.shape_cast %49 : vector<1x1x1xf32> to vector<1x1xf32>
      %51 = vector.shape_cast %48 : vector<1x1xf32> to vector<1x1x1xf32>
      tpu.vector_store %arg5[%c0_25, %c0_26, %c0_27], %51 {strides = array<i32>} : memref<1x1x1xf32, #tpu.memory_space<vmem>>, vector<1x1x1xf32>,
    } else {
    }
    return
  }
  func.func @transform_0(%arg0: i32, %arg1: i32, %arg2: i32) -> (i32, i32, i32, i32) {
    %c1_i32 = arith.constant 1 : i32
    %0 = arith.muli %arg0, %c1_i32 : i32
    %1 = arith.addi %0, %arg2 : i32
    %c0_i32 = arith.constant 0 : i32
    %2 = arith.minsi %1, %c0_i32 : i32
    %c0_i32_0 = arith.constant 0 : i32
    %c0_i32_1 = arith.constant 0 : i32
    %c0_i32_2 = arith.constant 0 : i32
    return %arg1, %c0_i32_0, %c0_i32_1, %2 : i32, i32, i32, i32
  }
  func.func @transform_1(%arg0: i32, %arg1: i32, %arg2: i32) -> (i32, i32, i32, i32) {
    %c1_i32 = arith.constant 1 : i32
    %0 = arith.muli %arg0, %c1_i32 : i32
    %1 = arith.addi %0, %arg2 : i32
    %c0_i32 = arith.constant 0 : i32
    %2 = arith.minsi %1, %c0_i32 : i32
    %c0_i32_0 = arith.constant 0 : i32
    %c0_i32_1 = arith.constant 0 : i32
    %c0_i32_2 = arith.constant 0 : i32
    return %arg1, %c0_i32_0, %c0_i32_1, %2 : i32, i32, i32, i32
  }
  func.func @transform_2(%arg0: i32, %arg1: i32, %arg2: i32) -> (i32, i32, i32) {
    %c2_i32 = arith.constant 2 : i32
    %0 = arith.muli %arg0, %c2_i32 : i32
    %1 = arith.addi %0, %arg1 : i32
    %c0_i32 = arith.constant 0 : i32
    %c0_i32_0 = arith.constant 0 : i32
    %c0_i32_1 = arith.constant 0 : i32
    return %1, %c0_i32, %c0_i32_0 : i32, i32, i32
  }
}

</mosaic_0001>

<llo_original>
// kernel: tpu_custom_call.1
$region0: #{tpu_custom_call.1}
  #allocation0 [shape = 'u32[]', space=smem, size = 0x4, offset = 0x4, fixed_abs, tag = 'smem constant byte address 0x4 - core index']
  #allocation1 [shape = 'u32[144,128]{1,0:T(1,128)}', space=vmem, size = 0x12000, scoped, tag = 'internal scratch']
  #allocation2 [shape = 'f32[1,8,32]{2,1,0:T(8,128)}', space=vmem, size = 0x1000, scoped, tag = 'scratch operand']
  %s0 = inlined_call_operand.hbm [shape: f32[2,4,8,32], index: 0, kind: input, shape index: {}]
  %s1 = inlined_call_operand.hbm [shape: s32[2,1,8,32], index: 1, kind: input, shape index: {}]
  %s2 = inlined_call_operand.vmem [shape: f32[2,1,1], index: 2, kind: output, shape index: {}]
  %s3 = sld [smem:[#allocation0]]
  $region57: #{tpu_custom_call.1} parent=0
    _
  %s5 = ssub.s32 1, %s3
  %s6 = scalar_select 0, %s5, %s3
  $region1: #{tpu_custom_call.1} parent=0
    #allocation3 [shape = 'u8[32768]{0}', space=vmem, size = 0x8000, scoped, tag = 'input window, operand 0']
    #allocation4 [shape = 's32[2]{0}', space=sflag, size = 0x8, scoped, tag = 'scoped memory for tpu_custom_call.1']
    #allocation5 [shape = 'u8[8192]{0}', space=vmem, size = 0x2000, scoped, tag = 'input window, operand 1']
    #allocation6 [shape = 's32[2]{0}', space=sflag, size = 0x8, scoped, tag = 'scoped memory for tpu_custom_call.1']
    %7 = vsyncpa [#allocation4], 0
    %s8 = scalar_lea.sflag [#allocation4], 1
    %9 = vsyncpa %s8, 0
    %10 = vsyncpa [#allocation6], 0
    %s11 = scalar_lea.sflag [#allocation6], 1
    %12 = vsyncpa %s11, 0
    loop: start=0, step=1, limit=4
    $region2: #{tpu_custom_call.1} parent=1 // loop_pre_header
      _
    $region3: #{tpu_custom_call.1} parent=1 // loop_header
      %s14 = sphi 0, %s18
      %p15 = scmp.ge.s32.totalorder %s14, 4
      %s21 = sphi 0, %s40
      %s22 = sphi 0, %s36
      %s23 = sphi 0, %s32
      %s24 = sphi 0, %s21
      %s25 = sphi 0, %s22
      %s26 = sphi 0, %s23
      %s27 = sphi 0, %s24
      %s28 = sphi 0, %s25
      %s29 = sphi 0, %s26
      %s51 = sphi 0, %s53
      %s54 = sphi 0, %s51
      %s55 = sphi 0, %s54
      %s71 = sphi 0, %s55
      %s85 = sphi 0, %s87
      %s88 = sphi 0, %s85
      %s89 = sphi 0, %s88
      %s105 = sphi 0, %s89
      %s115 = sphi 0, %s117
      %s118 = sphi 0, %s115
      %s119 = sphi 0, %s118
      %s135 = sphi 0, %s119
    $region4: #{tpu_custom_call.1} parent=1 // loop_header_branch
      %17 = sbr.rel (%p15) target = $region8
    $region5: #{tpu_custom_call.1} parent=1 // loop_body
      %s19 = ssub.s32 %s14, 1
      %s20 = ssub.s32 %s14, 2
      %s30 = sadd.s32 1, %s23
      %p31 = scmp.ge.s32.totalorder %s30, 1
      %s32 = scalar_select %p31, 0, %s30
      %s33 = sadd.s32 1, %s22
      %s34 = scalar_select %p31, %s33, %s22
      %p35 = scmp.ge.s32.totalorder %s34, 2
      %s36 = scalar_select %p35, 0, %s34
      %s37 = sadd.s32 1, %s21
      %s38 = scalar_select %p35, %s37, %s21
      %p39 = scmp.ge.s32.totalorder %s38, 1
      %s40 = scalar_select %p39, 0, %s38
      %s41 = sadd.s32 %s21, %s23
      %p42 = scmp.lt.s32.totalorder %s41, 0
      %s43 = scalar_select %p42, %s41, 0
      %s44 = sadd.s32 %s40, %s32
      %p45 = scmp.lt.s32.totalorder %s44, 0
      %s46 = scalar_select %p45, %s44, 0
      %s47 = ssub.s32 %s22, %s36
      %s48 = ssub.s32 %s43, %s46
      %s49 = sor.u32 %s47, %s48
      %p50 = scmp.eq.s32.totalorder %s49, 0
      %s52 = sadd.s32 %s51, 1
      %s53 = scalar_select %p50, %s51, %s52
      %p56 = pneg %p50
      %p57 = scmp.eq.s32.totalorder %s14, 1
      %p58 = por %p56, %p57
      %p59 = scmp.ne.s32.totalorder %s51, %s54
      %p60 = scmp.eq.s32.totalorder %s14, 0
      %p61 = por %p59, %p60
      %p62 = scmp.ne.s32.totalorder %s51, %s54
      %p63 = scmp.eq.s32.totalorder %s19, 1
      %p64 = por %p62, %p63
      %p65 = scmp.ne.s32.totalorder %s54, %s55
      %p66 = scmp.eq.s32.totalorder %s19, 0
      %p67 = por %p65, %p66
      %p68 = scmp.ne.s32.totalorder %s54, %s55
      %p69 = scmp.eq.s32.totalorder %s20, 1
      %p70 = por %p68, %p69
      %p72 = scmp.ne.s32.totalorder %s55, %s71
      %p73 = scmp.eq.s32.totalorder %s20, 0
      %p74 = por %p72, %p73
      %s75 = sadd.s32 %s21, %s23
      %p76 = scmp.lt.s32.totalorder %s75, 0
      %s77 = scalar_select %p76, %s75, 0
      %s78 = sadd.s32 %s40, %s32
      %p79 = scmp.lt.s32.totalorder %s78, 0
      %s80 = scalar_select %p79, %s78, 0
      %s81 = ssub.s32 %s22, %s36
      %s82 = ssub.s32 %s77, %s80
      %s83 = sor.u32 %s81, %s82
      %p84 = scmp.eq.s32.totalorder %s83, 0
      %s86 = sadd.s32 %s85, 1
      %s87 = scalar_select %p84, %s85, %s86
      %p90 = pneg %p84
      %p91 = scmp.eq.s32.totalorder %s14, 1
      %p92 = por %p90, %p91
      %p93 = scmp.ne.s32.totalorder %s85, %s88
      %p94 = scmp.eq.s32.totalorder %s14, 0
      %p95 = por %p93, %p94
      %p96 = scmp.ne.s32.totalorder %s85, %s88
      %p97 = scmp.eq.s32.totalorder %s19, 1
      %p98 = por %p96, %p97
      %p99 = scmp.ne.s32.totalorder %s88, %s89
      %p100 = scmp.eq.s32.totalorder %s19, 0
      %p101 = por %p99, %p100
      %p102 = scmp.ne.s32.totalorder %s88, %s89
      %p103 = scmp.eq.s32.totalorder %s20, 1
      %p104 = por %p102, %p103
      %p106 = scmp.ne.s32.totalorder %s89, %s105
      %p107 = scmp.eq.s32.totalorder %s20, 0
      %p108 = por %p106, %p107
      %s109 = smul.u32 %s21, 2
      %s110 = sadd.s32 %s109, %s22
      %s111 = smul.u32 %s40, 2
      %s112 = sadd.s32 %s111, %s36
      %s113 = ssub.s32 %s110, %s112
      %p114 = scmp.eq.s32.totalorder %s113, 0
      %s116 = sadd.s32 %s115, 1
      %s117 = scalar_select %p114, %s115, %s116
      %p120 = pneg %p114
      %p121 = scmp.eq.s32.totalorder %s14, 1
      %p122 = por %p120, %p121
      %p123 = scmp.ne.s32.totalorder %s115, %s118
      %p124 = scmp.eq.s32.totalorder %s14, 0
      %p125 = por %p123, %p124
      %p126 = scmp.ne.s32.totalorder %s115, %s118
      %p127 = scmp.eq.s32.totalorder %s19, 1
      %p128 = por %p126, %p127
      %p129 = scmp.ne.s32.totalorder %s118, %s119
      %p130 = scmp.eq.s32.totalorder %s19, 0
      %p131 = por %p129, %p130
      %p132 = scmp.ne.s32.totalorder %s118, %s119
      %p133 = scmp.eq.s32.totalorder %s20, 1
      %p134 = por %p132, %p133
      %p136 = scmp.ne.s32.totalorder %s119, %s135
      %p137 = scmp.eq.s32.totalorder %s20, 0
      %p138 = por %p136, %p137
      %p139 = scmp.le.s32.totalorder 1, %s14
      %p140 = scmp.lt.s32.totalorder %s14, 3
      %p141 = pnand %p139, %p140
      %p142 = pneg %p141
      // Predicated region
      $region9: #{tpu_custom_call.1} parent=5 // pred_check
        _
      $region10: #{tpu_custom_call.1} parent=5 // pred_check_branch
        %144 = sbr.rel (%p141) target = $region12
      $region11: #{tpu_custom_call.1} parent=5 // pred_region
        %s145 = ssub.s32 %s14, 1
      $region12: #{tpu_custom_call.1} parent=5 // pred_fallthru
        _
      %p146 = scmp.lt.s32.totalorder %s14, 2
      // Predicated region
      $region13: #{tpu_custom_call.1} parent=5 // pred_check
        %p147 = pneg %p146
      $region14: #{tpu_custom_call.1} parent=5 // pred_check_branch
        %149 = sbr.rel (%p147) target = $region16
      $region15: #{tpu_custom_call.1} parent=5 // pred_region
        // Predicated region
        $region17: #{tpu_custom_call.1} parent=15 // pred_check
          %p150 = pneg %p61
        $region18: #{tpu_custom_call.1} parent=15 // pred_check_branch
          %152 = sbr.rel (%p150) target = $region20
        $region19: #{tpu_custom_call.1} parent=15 // pred_region
          %s153 = sand.u32 %s51, 1
          %s154 = scalar_lea.sflag [#allocation4], %s153
          %s155 = sand.u32 %s51, 1
          %s156 = smul.addr %s155, 32
          %s157 = scalar_lea.vmem [#allocation3], %s156
          %s158 = sadd.s32 %s21, %s23
          %p159 = scmp.lt.s32.totalorder %s158, 0
          %s160 = scalar_select %p159, %s158, 0
          %s162 = ssub.s32 512, 512
          %163 = vsyncadd %s154, %s162
          %s164 = smul.addr %s22, 4
          %s165 = sadd.s32 %s160, %s164
          %s166 = smul.addr %s165, 128
          %s167 = scalar_lea.hbm %s0, %s166
          %s168 = sshll.u32 %s157, 4
          %s169 = int_to_ptr.vmem [resolvable:$true] %s168
          %174 = dma.hbm_to_vmem [thread:$0]  %s167, 512, %s169, %s154, 128, 128, 8
        $region20: #{tpu_custom_call.1} parent=15 // pred_fallthru
          _
        // Predicated region
        $region21: #{tpu_custom_call.1} parent=15 // pred_check
          %p175 = pneg %p95
        $region22: #{tpu_custom_call.1} parent=15 // pred_check_branch
          %177 = sbr.rel (%p175) target = $region24
        $region23: #{tpu_custom_call.1} parent=15 // pred_region
          %s178 = sand.u32 %s85, 1
          %s179 = scalar_lea.sflag [#allocation6], %s178
          %s180 = sand.u32 %s85, 1
          %s181 = smul.addr %s180, 8
          %s182 = scalar_lea.vmem [#allocation5], %s181
          %s183 = sadd.s32 %s21, %s23
          %p184 = scmp.lt.s32.totalorder %s183, 0
          %s185 = scalar_select %p184, %s183, 0
          %s187 = ssub.s32 128, 128
          %188 = vsyncadd %s179, %s187
          %s189 = sadd.s32 %s185, %s22
          %s190 = smul.addr %s189, 128
          %s191 = scalar_lea.hbm %s1, %s190
          %s193 = sshll.u32 %s182, 4
          %s194 = int_to_ptr.vmem [resolvable:$true] %s193
          %196 = dma.hbm_to_vmem [thread:$0]  %s191, 128, %s194, %s179
        $region24: #{tpu_custom_call.1} parent=15 // pred_fallthru
          _
      $region16: #{tpu_custom_call.1} parent=5 // pred_fallthru
        _
      %p197 = scmp.le.s32.totalorder 1, %s14
      %p198 = scmp.lt.s32.totalorder %s14, 3
      %p199 = pnand %p197, %p198
      %p200 = pneg %p199
      // Predicated region
      $region25: #{tpu_custom_call.1} parent=5 // pred_check
        _
      $region26: #{tpu_custom_call.1} parent=5 // pred_check_branch
        %202 = sbr.rel (%p199) target = $region28
      $region27: #{tpu_custom_call.1} parent=5 // pred_region
        %s203 = ssub.s32 %s14, 1
        %s204 = sand.u32 %s54, 1
        %s205 = scalar_lea.sflag [#allocation4], %s204
        %s206 = sand.u32 %s54, 1
        %s207 = smul.addr %s206, 32
        %s208 = scalar_lea.vmem [#allocation3], %s207
        // Predicated region
        $region29: #{tpu_custom_call.1} parent=27 // pred_check
          %p209 = pneg %p67
        $region30: #{tpu_custom_call.1} parent=27 // pred_check_branch
          %211 = sbr.rel (%p209) target = $region32
        $region31: #{tpu_custom_call.1} parent=27 // pred_region
          %212 = dma.done %s205, 512
        $region32: #{tpu_custom_call.1} parent=27 // pred_fallthru
          _
        %s213 = sand.u32 %s88, 1
        %s214 = scalar_lea.sflag [#allocation6], %s213
        %s215 = sand.u32 %s88, 1
        %s216 = smul.addr %s215, 8
        %s217 = scalar_lea.vmem [#allocation5], %s216
        // Predicated region
        $region33: #{tpu_custom_call.1} parent=27 // pred_check
          %p218 = pneg %p101
        $region34: #{tpu_custom_call.1} parent=27 // pred_check_branch
          %220 = sbr.rel (%p218) target = $region36
        $region35: #{tpu_custom_call.1} parent=27 // pred_region
          %221 = dma.done %s214, 128
        $region36: #{tpu_custom_call.1} parent=27 // pred_fallthru
          _
        %s222 = sand.u32 %s54, 1
        %s223 = scalar_lea.sflag [#allocation4], %s222
        %s224 = sand.u32 %s54, 1
        %s225 = smul.addr %s224, 32
        %s226 = scalar_lea.vmem [#allocation3], %s225
        %p227 = pneg %p67
        %p228 = pneg %p64
        %s229 = sand.u32 %s88, 1
        %s230 = scalar_lea.sflag [#allocation6], %s229
        %s231 = sand.u32 %s88, 1
        %s232 = smul.addr %s231, 8
        %s233 = scalar_lea.vmem [#allocation5], %s232
        %p234 = pneg %p101
        %p235 = pneg %p98
        %p236 = pneg %p131
        %p237 = pneg %p128
        %s238 = smul.u32 %s24, 2
        %s239 = sadd.s32 %s238, %s25
        %p240 = scmp.lt.s32.totalorder %s239, 1
        %s241 = scalar_select %p240, %s239, 1
        %s242 = scalar_lea.vmem %s2, %s241
        %s243 = sadd.s32 %s24, %s26
        %p244 = scmp.lt.s32.totalorder %s243, 0
        %s245 = scalar_select %p244, %s243, 0
        %s246 = sadd.s32 %s24, %s26
        %p247 = scmp.lt.s32.totalorder %s246, 0
        %s248 = scalar_select %p247, %s246, 0
        %s249 = smul.u32 %s24, 2
        %s250 = sadd.s32 %s249, %s25
        %p251 = scmp.lt.s32.totalorder %s250, 1
        %s252 = scalar_select %p251, %s250, 1
        %s253 = scalar_lea.vmem %s2, %s252
        %s254 = smul.u32 %s24, 2
        %s255 = sadd.s32 %s254, %s25
        %p256 = scmp.eq.s32.totalorder %s26, 0
        // Predicated region
        $region37: #{tpu_custom_call.1} parent=27 // pred_check
          %p257 = pneg %p256
        $region38: #{tpu_custom_call.1} parent=27 // pred_check_branch
          %259 = sbr.rel (%p257) target = $region40
        $region39: #{tpu_custom_call.1} parent=27 // pred_region
          %vm260 = vcmask 261120
          %261 = vst.msk [vmem:[#allocation2] sm:$0xff] %vm260, 0.0
        $region40: #{tpu_custom_call.1} parent=27 // pred_fallthru
          _
        %v262 = vld [vmem:[%s208] sm:$0xff]
        %v263 = vld [vmem:[%s208 + $0x8] sm:$0xff]
        %v264 = vld [vmem:[%s208 + $0x10] sm:$0xff]
        %v265 = vld [vmem:[%s208 + $0x18] sm:$0xff]
        %v266 = vld [vmem:[%s217] sm:$0xff]
        %s267 = sadd.s32 %s24, %s26
        %v268 = vlaneseq
        %v269 = vand.u32 %v268, 127
        %s270 = smul.u32 %s267, 32
        %v271 = vstv %s270
        %v272 = vadd.s32 %v271, %v269
        %vm273 = vcmp.lt.s32.totalorder %v272, 32
        %vm274 = vcmask 261120
        %v275 = vsel %vm274, %v262, -inf
        %v276 = vsel %vm274, %v263, -inf
        %v277 = vsel %vm274, %v264, -inf
        %v278 = vsel %vm274, %v265, -inf
        %v279 = vmax.f32 %v275, %v276
        %v280 = vmax.f32 %v277, %v278
        %v281 = vmax.f32 %v279, %v280
        %v282 = vsub.f32 %v262, %v281
        %v283 = vsub.f32 %v263, %v281
        %v284 = vsub.f32 %v264, %v281
        %v285 = vsub.f32 %v265, %v281
        %v286 = vmul.f32 %v282, 1.442695
        %v287 = vpow.pop %v286
        %v288 = vmul.f32 %v283, 1.442695
        %v289 = vpow.pop %v288
        %v290 = vmul.f32 %v284, 1.442695
        %v291 = vpow.pop %v290
        %v292 = vmul.f32 %v285, 1.442695
        %v293 = vpow.pop %v292
        %v294 = vsel %vm274, %v287, 0.0
        %v295 = vsel %vm274, %v289, 0.0
        %v296 = vadd.f32 %v294, %v295
        %v297 = vsel %vm274, %v291, 0.0
        %v298 = vadd.f32 %v296, %v297
        %v299 = vsel %vm274, %v293, 0.0
        %v300 = vadd.f32 %v298, %v299
        %v301 = vlog2.pop %v300
        %v302 = vmul.f32 %v301, 0.6931472
        %v303 = vadd.f32 %v281, %v302
        %vm304 = vcmp.eq.s32.totalorder %v266, 0
        %vm305 = vcmp.eq.s32.totalorder %v266, 1
        %vm306 = vcmp.eq.s32.totalorder %v266, 2
        %vm307 = vcmp.eq.s32.totalorder %v266, 3
        %v308 = vsel %vm304, %v262, 0.0
        %v309 = vsel %vm305, %v263, 0.0
        %v310 = vsel %vm306, %v264, 0.0
        %v311 = vsel %vm307, %v265, 0.0
        %v312 = vsel %vm274, %v308, 0.0
        %v313 = vsel %vm274, %v309, 0.0
        %v314 = vadd.f32 %v312, %v313
        %v315 = vsel %vm274, %v310, 0.0
        %v316 = vadd.f32 %v314, %v315
        %v317 = vsel %vm274, %v311, 0.0
        %v318 = vadd.f32 %v316, %v317
        %vm319 = vcmp.ne.s32.totalorder %v266, 255
        %vm320 = vmand %vm319, %vm273
        %v321 = vsub.f32 %v303, %v318
        %v322 = vsel %vm320, %v321, 0.0
        %v323 = vld [vmem:[#allocation2] sm:$0xff]
        %v324 = vadd.f32 %v323, %v322
        %325 = vst.msk [vmem:[#allocation2] sm:$0xff] %vm274, %v324
        // Predicated region
        $region41: #{tpu_custom_call.1} parent=27 // pred_check
          %p326 = pneg %p256
        $region42: #{tpu_custom_call.1} parent=27 // pred_check_branch
          %328 = sbr.rel (%p326) target = $region44
        $region43: #{tpu_custom_call.1} parent=27 // pred_region
          %v329 = vld [vmem:[#allocation2] sm:$0xff]
          %v330 = vsel %vm274, %v329, 0.0
          %331 = vadd.xlane.f32.xlu0 %v330
          %v332 = vpop.xlane.xlu0 %331
          %v333 = vrot.slane %v332, 4
          %v334 = vadd.f32 %v332, %v333
          %v335 = vrot.slane %v334, 2
          %v336 = vadd.f32 %v334, %v335
          %v337 = vrot.slane %v336, 1
          %v338 = vadd.f32 %v336, %v337
          %s339 = vtos %v338
          %v340 = vstv %s339
          %vm341 = vcmask 0
          %342 = vst.msk [vmem:[%s253] sm:$0x1] %vm341, %v340
        $region44: #{tpu_custom_call.1} parent=27 // pred_fallthru
          _
        %s343 = smul.u32 %s24, 2
        %s344 = sadd.s32 %s343, %s25
        %p345 = scmp.lt.s32.totalorder %s344, 1
        %s346 = scalar_select %p345, %s344, 1
        %s347 = scalar_lea.vmem %s2, %s346
        // Predicated region
        $region45: #{tpu_custom_call.1} parent=27 // pred_check
          %p348 = pneg %p128
        $region46: #{tpu_custom_call.1} parent=27 // pred_check_branch
          %350 = sbr.rel (%p348) target = $region48
        $region47: #{tpu_custom_call.1} parent=27 // pred_region
          %s351 = smul.u32 %s24, 2
          %s352 = sadd.s32 %s351, %s25
        $region48: #{tpu_custom_call.1} parent=27 // pred_fallthru
          _
      $region28: #{tpu_custom_call.1} parent=5 // pred_fallthru
        _
      %p353 = scmp.le.s32.totalorder 2, %s14
      // Predicated region
      $region49: #{tpu_custom_call.1} parent=5 // pred_check
        %p354 = pneg %p353
      $region50: #{tpu_custom_call.1} parent=5 // pred_check_branch
        %356 = sbr.rel (%p354) target = $region52
      $region51: #{tpu_custom_call.1} parent=5 // pred_region
        %s357 = ssub.s32 %s14, 2
        // Predicated region
        $region53: #{tpu_custom_call.1} parent=51 // pred_check
          %p358 = pneg %p134
        $region54: #{tpu_custom_call.1} parent=51 // pred_check_branch
          %360 = sbr.rel (%p358) target = $region56
        $region55: #{tpu_custom_call.1} parent=51 // pred_region
          %s361 = smul.u32 %s27, 2
          %s362 = sadd.s32 %s361, %s28
          %p363 = scmp.lt.s32.totalorder %s362, 1
          %s364 = scalar_select %p363, %s362, 1
          %s365 = scalar_lea.vmem %s2, %s364
        $region56: #{tpu_custom_call.1} parent=51 // pred_fallthru
          _
      $region52: #{tpu_custom_call.1} parent=5 // pred_fallthru
        _
    $region6: #{tpu_custom_call.1} parent=1 // loop_footer
      %s18 = sadd.s32 1, %s14
    $region7: #{tpu_custom_call.1} parent=1 // loop_footer_branch
      %13 = sbr.rel target = $region3
    $region8: #{tpu_custom_call.1} parent=1 // loop_exit
      _
    %366 = vsyncpa [#allocation4], 1
    %s367 = scalar_lea.sflag [#allocation4], 1
    %368 = vsyncpa %s367, 1
    %369 = vsyncpa [#allocation6], 1
    %s370 = scalar_lea.sflag [#allocation6], 1
    %371 = vsyncpa %s370, 1

</llo_original>
